<compile_context>
chip_gen: v6e
topology: v6e:2x2x1
jax: 0.10.0
libtpu: 0.0.40
codegen_flags: <defaults>
</compile_context>

<pallas_src>
import jax
import jax.numpy as jnp
from jax.experimental import pallas as pl
from jax.experimental.pallas import tpu as pltpu


# ----------------------------------------------------------------------------
# helpers
# ----------------------------------------------------------------------------
def _round_up(x, m):
    return (x + m - 1) // m * m


def _pad2(a, rows, cols):
    return jnp.pad(a, ((0, rows - a.shape[0]), (0, cols - a.shape[1])))


# ----------------------------------------------------------------------------
# single-step kernel (== the PyTorch forward): 2 fused MXU matmuls
# ----------------------------------------------------------------------------
def rnn_step_kernel(x_ref, w1_ref, b1_ref, w2_ref, b2_ref, out_ref, ycomb_ref):
    x = x_ref[...]                                              # [B_p, K1_p]
    # y = [hidden_new | output1]  (fused i2h + i2o), f32 accumulation.
    y = jnp.dot(x, w1_ref[...], preferred_element_type=jnp.float32) + b1_ref[...]
    # output = o2o([hidden_new | output1]); cast only the MXU operand so the
    # bias add / store stay f32 (v5e-friendly), bf16 feeds the MXU on v6e/v7x.
    out = (jnp.dot(y.astype(w2_ref.dtype), w2_ref[...],
                   preferred_element_type=jnp.float32) + b2_ref[...])
    out_ref[...] = out.astype(out_ref.dtype)                    # [B_p, N2_p] full-width store
    ycomb_ref[...] = y.astype(ycomb_ref.dtype)                  # [B_p, N1_p] full-width store


def prepare_rnn_params(params, dtype=jnp.float32):
    """One-time fuse + transpose + pad of the PyTorch-style weights.

    params: W_i2h [H, C+I+H], b_i2h [H], W_i2o [O, C+I+H], b_i2o [O],
            W_o2o [O, H+O],   b_o2o [O]
    """
    H = params["W_i2h"].shape[0]
    O = params["W_i2o"].shape[0]
    K1 = params["W_i2h"].shape[1]          # C + I + H
    N1 = H + O

    K1_p = _round_up(K1, 128)
    N1_p = _round_up(N1, 128)
    N2_p = _round_up(O, 128)

    # Fused first layer: x_comb @ W1 + b1  ->  [hidden_new | output1]
    W1 = jnp.concatenate([params["W_i2h"].T, params["W_i2o"].T], axis=1)  # [K1, N1]
    b1 = jnp.concatenate([params["b_i2h"], params["b_i2o"]])[None, :]     # [1, N1]
    W2 = params["W_o2o"].T                                                # [N1, O]
    b2 = params["b_o2o"][None, :]                                         # [1, O]

    return dict(
        W1=_pad2(W1, K1_p, N1_p).astype(dtype),
        b1=_pad2(b1, 1, N1_p).astype(jnp.float32),   # biases stay f32 (VPU adds)
        W2=_pad2(W2, N1_p, N2_p).astype(dtype),
        b2=_pad2(b2, 1, N2_p).astype(jnp.float32),
        H=H, O=O, K1=K1, K1_p=K1_p, N1_p=N1_p, N2_p=N2_p, dtype=dtype,
    )


def rnn_forward(category, inp, hidden, prepared):
    """Single RNN step, identical math to the PyTorch module's forward()."""
    B = category.shape[0]
    H, O = prepared["H"], prepared["O"]
    K1, K1_p = prepared["K1"], prepared["K1_p"]
    N1_p, N2_p = prepared["N1_p"], prepared["N2_p"]
    B_p = _round_up(B, 8)

    x = jnp.concatenate([category, inp, hidden], axis=1)        # [B, K1]
    assert x.shape[1] == K1
    x_p = _pad2(x, B_p, K1_p).astype(prepared["dtype"])

    vmem = pl.BlockSpec(memory_space=pltpu.VMEM)
    out_p, y_p = pl.pallas_call(
        rnn_step_kernel,
        out_shape=(
            jax.ShapeDtypeStruct((B_p, N2_p), jnp.float32),     # output
            jax.ShapeDtypeStruct((B_p, N1_p), jnp.float32),     # [hidden_new | output1]
        ),
        in_specs=[vmem] * 5,
        out_specs=(vmem, vmem),
    )(x_p, prepared["W1"], prepared["b1"], prepared["W2"], prepared["b2"])

    return out_p[:B, :O], y_p[:B, :H]


# ----------------------------------------------------------------------------
# whole-sequence kernel: grid over timesteps, weights resident in VMEM,
# hidden state carried in a VMEM scratch across grid steps.
# ----------------------------------------------------------------------------
def rnn_seq_kernel(zcat_ref, hid0_ref, inp_ref, wi_ref, wh_ref, w2_ref, b2_ref,
                   out_ref, ylast_ref, y_scr):
    @pl.when(pl.program_id(0) == 0)
    def _():
        # hidden0 lives in cols [:H] of the padded combined state; rest is 0.
        y_scr[...] = hid0_ref[...]

    y_prev = y_scr[...]                                          # [B_p, N1_p]
    # y = cat@Wc + b1 (hoisted into zcat) + inp_t@Wi + hidden@Wh
    y = (zcat_ref[...]
         + jnp.dot(inp_ref[0], wi_ref[...], preferred_element_type=jnp.float32)
         + jnp.dot(y_prev, wh_ref[...], preferred_element_type=jnp.float32))
    out = jnp.dot(y, w2_ref[...], preferred_element_type=jnp.float32) + b2_ref[...]

    y_scr[...] = y                                               # carry to next step
    out_ref[...] = out[None, :, :].astype(out_ref.dtype)         # per-step output slab
    ylast_ref[...] = y.astype(ylast_ref.dtype)                   # final-step combined state


def rnn_sequence_forward(category, inputs_seq, hidden0, params):
    """Run T RNN steps (teacher-forced inputs) inside one pallas_call.

    inputs_seq: [T, B, I].  Returns (outputs [T, B, O], final_hidden [B, H]).
    """
    T, B, I = inputs_seq.shape
    C = category.shape[1]
    H = hidden0.shape[1]
    O = params["W_o2o"].shape[0]
    N1 = H + O

    B_p = _round_up(B, 8)
    I_p = _round_up(I, 128)
    N1_p = _round_up(N1, 128)
    N2_p = _round_up(O, 128)

    # ---- one-time glue (outside the per-step loop) -------------------------
    W1 = jnp.concatenate([params["W_i2h"].T, params["W_i2o"].T], axis=1)  # [C+I+H, N1]
    b1 = jnp.concatenate([params["b_i2h"], params["b_i2o"]])[None, :]     # [1, N1]
    Wc, Wi, Wh = W1[:C], W1[C:C + I], W1[C + I:]

    # category is constant over the sequence: fold its contribution + b1 once.
    zcat_p = _pad2(category @ Wc + b1, B_p, N1_p)                 # [B_p, N1_p]
    hid0_p = _pad2(hidden0, B_p, N1_p)                            # hidden in cols [:H]
    Wi_p = _pad2(Wi, I_p, N1_p)                                   # [I_p, N1_p]
    Wh_p = _pad2(Wh, N1_p, N1_p)                                  # real rows [:H], rest 0
    W2_p = _pad2(params["W_o2o"].T, N1_p, N2_p)
    b2_p = _pad2(params["b_o2o"][None, :], 1, N2_p)
    inputs_p = jnp.pad(inputs_seq, ((0, 0), (0, B_p - B), (0, I_p - I)))

    resident2d = lambda shape: pl.BlockSpec(shape, lambda t: (0, 0))

    outs_p, ylast_p = pl.pallas_call(
        rnn_seq_kernel,
        grid=(T,),
        out_shape=(
            jax.ShapeDtypeStruct((T, B_p, N2_p), jnp.float32),
            jax.ShapeDtypeStruct((B_p, N1_p), jnp.float32),
        ),
        in_specs=[
            resident2d((B_p, N1_p)),                              # zcat (+ b1)
            resident2d((B_p, N1_p)),                              # hidden0
            pl.BlockSpec((1, B_p, I_p), lambda t: (t, 0, 0)),     # input at step t
            resident2d((I_p, N1_p)),                              # Wi (resident)
            resident2d((N1_p, N1_p)),                             # Wh (resident)
            resident2d((N1_p, N2_p)),                             # W2 (resident)
            resident2d((1, N2_p)),                                # b2 (resident)
        ],
        out_specs=(
            pl.BlockSpec((1, B_p, N2_p), lambda t: (t, 0, 0)),    # output at step t
            resident2d((B_p, N1_p)),                              # last combined state
        ),
        scratch_shapes=[pltpu.VMEM((B_p, N1_p), jnp.float32)],    # carried hidden state
        compiler_params=pltpu.CompilerParams(
            dimension_semantics=("arbitrary",)),                  # sequential recurrence
    )(zcat_p, hid0_p, inputs_p, Wi_p, Wh_p, W2_p, b2_p)

    return outs_p[:, :B, :O], ylast_p[:B, :H]


# ----------------------------------------------------------------------------
def _init_linear(key, out_features, in_features):
    """Deterministic PyTorch-like init: U(-1/sqrt(fan_in), 1/sqrt(fan_in))."""
    kw, kb = jax.random.split(key)
    bound = 1.0 / jnp.sqrt(jnp.float32(in_features))
    W = jax.random.uniform(kw, (out_features, in_features), jnp.float32,
                           minval=-bound, maxval=bound)
    b = jax.random.uniform(kb, (out_features,), jnp.float32,
                           minval=-bound, maxval=bound)
    return W, b


if __name__ == "__main__":
    batch = 2
    n_categories = 8
    input_size = 16
    hidden_size = 32
    output_size = 16
    seq_len = 8

    key = jax.random.PRNGKey(0)
    k_cat, k_inp, k_hid, k_i2h, k_i2o, k_o2o, k_seq = jax.random.split(key, 7)

    category = jax.random.normal(k_cat, (batch, n_categories), jnp.float32)
    inp = jax.random.normal(k_inp, (batch, input_size), jnp.float32)
    hidden = jax.random.normal(k_hid, (batch, hidden_size), jnp.float32)
    inputs_seq = jax.random.normal(k_seq, (seq_len, batch, input_size), jnp.float32)

    comb = n_categories + input_size + hidden_size
    W_i2h, b_i2h = _init_linear(k_i2h, hidden_size, comb)
    W_i2o, b_i2o = _init_linear(k_i2o, output_size, comb)
    W_o2o, b_o2o = _init_linear(k_o2o, output_size, hidden_size + output_size)
    params = dict(W_i2h=W_i2h, b_i2h=b_i2h,
                  W_i2o=W_i2o, b_i2o=b_i2o,
                  W_o2o=W_o2o, b_o2o=b_o2o)

    # Pure-JAX reference (same math as the PyTorch forward).
    x_comb = jnp.concatenate([category, inp, hidden], axis=1)
    ref_hid = x_comb @ W_i2h.T + b_i2h
    ref_o1 = x_comb @ W_i2o.T + b_i2o
    ref_out = jnp.concatenate([ref_hid, ref_o1], axis=1) @ W_o2o.T + b_o2o

    # ---- single step, f32 (default) ----------------------------------------
    prepared_f32 = prepare_rnn_params(params, dtype=jnp.float32)
    out, hid_new = rnn_forward(category, inp, hidden, prepared_f32)
    out = jax.block_until_ready(out)
    hid_new = jax.block_until_ready(hid_new)
    assert out.shape == (batch, output_size)
    assert hid_new.shape == (batch, hidden_size)
    assert jnp.allclose(out, ref_out, atol=1e-5, rtol=1e-5)
    assert jnp.allclose(hid_new, ref_hid, atol=1e-5, rtol=1e-5)

    # ---- single step, bf16 MXU operands (v6e/v7x path), f32 accumulation ---
    prepared_bf16 = prepare_rnn_params(params, dtype=jnp.bfloat16)
    out_b, hid_b = rnn_forward(category, inp, hidden, prepared_bf16)
    out_b = jax.block_until_ready(out_b)
    hid_b = jax.block_until_ready(hid_b)
    assert jnp.allclose(out_b, ref_out, atol=1e-1, rtol=1e-1)
    assert jnp.allclose(hid_b, ref_hid, atol=1e-1, rtol=1e-1)

    # ---- whole sequence in one pallas_call (weights resident, grid=(T,)) ---
    seq_out, seq_hid = rnn_sequence_forward(category, inputs_seq, hidden, params)
    seq_out = jax.block_until_ready(seq_out)
    seq_hid = jax.block_until_ready(seq_hid)

    h = hidden
    ref_outs = []
    for t in range(seq_len):
        xc = jnp.concatenate([category, inputs_seq[t], h], axis=1)
        h = xc @ W_i2h.T + b_i2h
        o1 = xc @ W_i2o.T + b_i2o
        ref_outs.append(jnp.concatenate([h, o1], axis=1) @ W_o2o.T + b_o2o)
    ref_seq = jnp.stack(ref_outs)
    assert seq_out.shape == (seq_len, batch, output_size)
    assert seq_hid.shape == (batch, hidden_size)
    assert jnp.allclose(seq_out, ref_seq, atol=1e-4, rtol=1e-4)
    assert jnp.allclose(seq_hid, h, atol=1e-4, rtol=1e-4)

    # NOTE: self.softmax / LogSoftmax is defined in __init__ but never used in
    # forward(), so it is intentionally not applied here.
    print("KERNEL_OK")
</pallas_src>

<mosaic_0001>
module attributes {stable_mosaic.version = 11 : i64} {
  func.func @rnn_step_kernel(%arg0: memref<8x128xf32, #tpu.memory_space<vmem>>, %arg1: memref<128x128xf32, #tpu.memory_space<vmem>>, %arg2: memref<1x128xf32, #tpu.memory_space<vmem>>, %arg3: memref<128x128xf32, #tpu.memory_space<vmem>>, %arg4: memref<1x128xf32, #tpu.memory_space<vmem>>, %arg5: memref<8x128xf32, #tpu.memory_space<vmem>>, %arg6: memref<8x128xf32, #tpu.memory_space<vmem>>) attributes {dimension_semantics = [], scalar_prefetch = 0 : i64, scratch_operands = 0 : i64, tpu.core_type = #tpu.core_type<tc>} {
    %c0 = arith.constant 0 : index
    %c0_0 = arith.constant 0 : index
    %0 = vector.load %arg0[%c0, %c0_0] : memref<8x128xf32, #tpu.memory_space<vmem>>, vector<8x128xf32>
    %c0_1 = arith.constant 0 : index
    %c0_2 = arith.constant 0 : index
    %1 = vector.load %arg1[%c0_1, %c0_2] : memref<128x128xf32, #tpu.memory_space<vmem>>, vector<128x128xf32>
    %cst = arith.constant dense<0.000000e+00> : vector<8x128xf32>
    %2 = tpu.matmul %0, %1, %cst {dimension_numbers = #tpu.dot_dimension_numbers<[1], [0], [0], [1], [0, 0, 1, 1], [], []>} : vector<8x128xf32>, vector<128x128xf32>, vector<8x128xf32> -> vector<8x128xf32>
    %c0_3 = arith.constant 0 : index
    %c0_4 = arith.constant 0 : index
    %3 = vector.load %arg2[%c0_3, %c0_4] : memref<1x128xf32, #tpu.memory_space<vmem>>, vector<1x128xf32>
    %4 = vector.broadcast %3 : vector<1x128xf32> to vector<8x128xf32>
    %5 = arith.addf %2, %4 : vector<8x128xf32>
    %c0_5 = arith.constant 0 : index
    %c0_6 = arith.constant 0 : index
    %6 = vector.load %arg3[%c0_5, %c0_6] : memref<128x128xf32, #tpu.memory_space<vmem>>, vector<128x128xf32>
    %cst_7 = arith.constant dense<0.000000e+00> : vector<8x128xf32>
    %7 = tpu.matmul %5, %6, %cst_7 {dimension_numbers = #tpu.dot_dimension_numbers<[1], [0], [0], [1], [0, 0, 1, 1], [], []>} : vector<8x128xf32>, vector<128x128xf32>, vector<8x128xf32> -> vector<8x128xf32>
    %c0_8 = arith.constant 0 : index
    %c0_9 = arith.constant 0 : index
    %8 = vector.load %arg4[%c0_8, %c0_9] : memref<1x128xf32, #tpu.memory_space<vmem>>, vector<1x128xf32>
    %9 = vector.broadcast %8 : vector<1x128xf32> to vector<8x128xf32>
    %10 = arith.addf %7, %9 : vector<8x128xf32>
    %c0_10 = arith.constant 0 : index
    %c0_11 = arith.constant 0 : index
    %11 = vector.load %arg5[%c0_10, %c0_11] : memref<8x128xf32, #tpu.memory_space<vmem>>, vector<8x128xf32>
    tpu.vector_store %arg5[%c0_10, %c0_11], %10 {strides = array<i32>} : memref<8x128xf32, #tpu.memory_space<vmem>>, vector<8x128xf32>,
    %c0_12 = arith.constant 0 : index
    %c0_13 = arith.constant 0 : index
    %12 = vector.load %arg6[%c0_12, %c0_13] : memref<8x128xf32, #tpu.memory_space<vmem>>, vector<8x128xf32>
    tpu.vector_store %arg6[%c0_12, %c0_13], %5 {strides = array<i32>} : memref<8x128xf32, #tpu.memory_space<vmem>>, vector<8x128xf32>,
    return
  }
}

</mosaic_0001>

<llo_original>
// kernel: tpu_custom_call.1
$region0: #{tpu_custom_call.1}
  #allocation0 [shape = 'u32[]', space=smem, size = 0x4, offset = 0x4, fixed_abs, tag = 'smem constant byte address 0x4 - core index']
  #allocation1 [shape = 'u32[144,128]{1,0:T(1,128)}', space=vmem, size = 0x12000, scoped, tag = 'internal scratch']
  %s0 = inlined_call_operand.hbm [shape: f32[8,128], index: 0, kind: input, shape index: {}]
  %s1 = inlined_call_operand.hbm [shape: f32[128,128], index: 1, kind: input, shape index: {}]
  %s2 = inlined_call_operand.vmem [shape: f32[1,128], index: 2, kind: input, shape index: {}]
  %s3 = inlined_call_operand.hbm [shape: f32[128,128], index: 3, kind: input, shape index: {}]
  %s4 = inlined_call_operand.vmem [shape: f32[1,128], index: 4, kind: input, shape index: {}]
  %s5 = inlined_call_operand.hbm [shape: f32[8,128], index: 5, kind: output, shape index: {0}]
  %s6 = inlined_call_operand.hbm [shape: f32[8,128], index: 6, kind: output, shape index: {1}]
  %7 = xla_tuple %s5, %s6
  %s8 = sld [smem:[#allocation0]]
  $region50: #{tpu_custom_call.1} parent=0
    _
  %s10 = ssub.s32 1, %s8
  %s11 = scalar_select 0, %s10, %s8
  $region1: #{tpu_custom_call.1} parent=0
    #allocation2 [shape = 'u8[4096]{0}', space=vmem, size = 0x1000, scoped, tag = 'input window, operand 0, single buffered']
    #allocation3 [shape = 's32[1]{0}', space=sflag, size = 0x4, scoped, tag = 'scoped memory for tpu_custom_call.1']
    #allocation4 [shape = 's32[1]{0}', space=sflag, size = 0x4, scoped, tag = 'scoped memory for tpu_custom_call.1']
    #allocation5 [shape = 'u8[65536]{0}', space=vmem, size = 0x10000, scoped, tag = 'input window, operand 1, single buffered']
    #allocation6 [shape = 's32[1]{0}', space=sflag, size = 0x4, scoped, tag = 'scoped memory for tpu_custom_call.1']
    #allocation7 [shape = 'u8[65536]{0}', space=vmem, size = 0x10000, scoped, tag = 'input window, operand 3, single buffered']
    #allocation8 [shape = 'u8[4096]{0}', space=vmem, size = 0x1000, scoped, tag = 'output window, operand 0, single buffered']
    #allocation9 [shape = 'u8[4096]{0}', space=vmem, size = 0x1000, scoped, tag = 'output window, operand 1, single buffered']
    #allocation10 [shape = 's32[1]{0}', space=sflag, size = 0x4, scoped, tag = 'scoped memory for tpu_custom_call.1']
    %12 = vsyncpa [#allocation3], 0
    %13 = vsyncpa [#allocation6], 0
    %14 = vsyncpa [#allocation4], 0
    %15 = vsyncpa [#allocation10], 0
    // Predicated region
    $region2: #{tpu_custom_call.1} parent=1 // pred_check
      _
    $region3: #{tpu_custom_call.1} parent=1 // pred_check_branch
      %17 = sbr.rel (0) target = $region5
    $region4: #{tpu_custom_call.1} parent=1 // pred_region
      %s19 = ssub.s32 128, 128
      %20 = vsyncadd [#allocation3], %s19
      %s22 = sshll.u32 [#allocation2], 4
      %s23 = int_to_ptr.vmem [resolvable:$true] %s22
      %25 = dma.hbm_to_vmem [thread:$0]  %s0, 128, %s23, [#allocation3]
    $region5: #{tpu_custom_call.1} parent=1 // pred_fallthru
      _
    // Predicated region
    $region6: #{tpu_custom_call.1} parent=1 // pred_check
      _
    $region7: #{tpu_custom_call.1} parent=1 // pred_check_branch
      %27 = sbr.rel (0) target = $region9
    $region8: #{tpu_custom_call.1} parent=1 // pred_region
      %s29 = ssub.s32 2048, 2048
      %30 = vsyncadd [#allocation6], %s29
      %s31 = sshll.u32 [#allocation5], 4
      %s32 = int_to_ptr.vmem [resolvable:$true] %s31
      %37 = dma.hbm_to_vmem [thread:$0]  %s1, 2048, %s32, [#allocation6], 128, 128, 8
    $region9: #{tpu_custom_call.1} parent=1 // pred_fallthru
      _
    // Predicated region
    $region10: #{tpu_custom_call.1} parent=1 // pred_check
      _
    $region11: #{tpu_custom_call.1} parent=1 // pred_check_branch
      %39 = sbr.rel (0) target = $region13
    $region12: #{tpu_custom_call.1} parent=1 // pred_region
      _
    $region13: #{tpu_custom_call.1} parent=1 // pred_fallthru
      _
    // Predicated region
    $region14: #{tpu_custom_call.1} parent=1 // pred_check
      _
    $region15: #{tpu_custom_call.1} parent=1 // pred_check_branch
      %41 = sbr.rel (0) target = $region17
    $region16: #{tpu_custom_call.1} parent=1 // pred_region
      %s43 = ssub.s32 2048, 2048
      %44 = vsyncadd [#allocation6], %s43
      %s45 = sshll.u32 [#allocation7], 4
      %s46 = int_to_ptr.vmem [resolvable:$true] %s45
      %51 = dma.hbm_to_vmem [thread:$0]  %s3, 2048, %s46, [#allocation6], 128, 128, 8
    $region17: #{tpu_custom_call.1} parent=1 // pred_fallthru
      _
    // Predicated region
    $region18: #{tpu_custom_call.1} parent=1 // pred_check
      _
    $region19: #{tpu_custom_call.1} parent=1 // pred_check_branch
      %53 = sbr.rel (0) target = $region21
    $region20: #{tpu_custom_call.1} parent=1 // pred_region
      _
    $region21: #{tpu_custom_call.1} parent=1 // pred_fallthru
      _
    // Predicated region
    $region22: #{tpu_custom_call.1} parent=1 // pred_check
      _
    $region23: #{tpu_custom_call.1} parent=1 // pred_check_branch
      %55 = sbr.rel (0) target = $region25
    $region24: #{tpu_custom_call.1} parent=1 // pred_region
      %56 = dma.done [#allocation3], 128
    $region25: #{tpu_custom_call.1} parent=1 // pred_fallthru
      _
    // Predicated region
    $region26: #{tpu_custom_call.1} parent=1 // pred_check
      _
    $region27: #{tpu_custom_call.1} parent=1 // pred_check_branch
      %58 = sbr.rel (0) target = $region29
    $region28: #{tpu_custom_call.1} parent=1 // pred_region
      %59 = dma.done [#allocation6], 2048
    $region29: #{tpu_custom_call.1} parent=1 // pred_fallthru
      _
    // Predicated region
    $region30: #{tpu_custom_call.1} parent=1 // pred_check
      _
    $region31: #{tpu_custom_call.1} parent=1 // pred_check_branch
      %61 = sbr.rel (0) target = $region33
    $region32: #{tpu_custom_call.1} parent=1 // pred_region
      %62 = dma.done [#allocation6], 2048
    $region33: #{tpu_custom_call.1} parent=1 // pred_fallthru
      _
    %v63 = vld [vmem:[#allocation2] sm:$0xff]
    %v64 = vld [vmem:[#allocation5] sm:$0xff]
    %v65 = vld [vmem:[#allocation5 + $0x8] sm:$0xff]
    %v66 = vld [vmem:[#allocation5 + $0x10] sm:$0xff]
    %v67 = vld [vmem:[#allocation5 + $0x18] sm:$0xff]
    %v68 = vld [vmem:[#allocation5 + $0x20] sm:$0xff]
    %v69 = vld [vmem:[#allocation5 + $0x28] sm:$0xff]
    %v70 = vld [vmem:[#allocation5 + $0x30] sm:$0xff]
    %v71 = vld [vmem:[#allocation5 + $0x38] sm:$0xff]
    %v72 = vld [vmem:[#allocation5 + $0x40] sm:$0xff]
    %v73 = vld [vmem:[#allocation5 + $0x48] sm:$0xff]
    %v74 = vld [vmem:[#allocation5 + $0x50] sm:$0xff]
    %v75 = vld [vmem:[#allocation5 + $0x58] sm:$0xff]
    %v76 = vld [vmem:[#allocation5 + $0x60] sm:$0xff]
    %v77 = vld [vmem:[#allocation5 + $0x68] sm:$0xff]
    %v78 = vld [vmem:[#allocation5 + $0x70] sm:$0xff]
    %v79 = vld [vmem:[#allocation5 + $0x78] sm:$0xff]
    %v80 = vld [vmem:[%s2] sm:$0x1]
    %v82 = vlaneseq
    %v83 = vshrl.u32 %v82, 7
    %v84 = vsub.s32 0, %v83
    %v85 = vrot.slane %v80, %v84
    %87 = vmatprep.subr.mxu0 0.0
    %88 = vmatpush1.msra.mxu0 %v79
    %89 = vmatprep.subr.mxu0 0.0
    %90 = vmatpush1.msra.mxu0 %v78
    %91 = vmatprep.subr.mxu0 0.0
    %92 = vmatpush1.msra.mxu0 %v77
    %93 = vmatprep.subr.mxu0 0.0
    %94 = vmatpush1.msra.mxu0 %v76
    %95 = vmatprep.subr.mxu0 0.0
    %96 = vmatpush1.msra.mxu0 %v75
    %97 = vmatprep.subr.mxu0 0.0
    %98 = vmatpush1.msra.mxu0 %v74
    %99 = vmatprep.subr.mxu0 0.0
    %100 = vmatpush1.msra.mxu0 %v73
    %101 = vmatprep.subr.mxu0 0.0
    %102 = vmatpush1.msra.mxu0 %v72
    %103 = vmatprep.subr.mxu0 0.0
    %104 = vmatpush1.msra.mxu0 %v71
    %105 = vmatprep.subr.mxu0 0.0
    %106 = vmatpush1.msra.mxu0 %v70
    %107 = vmatprep.subr.mxu0 0.0
    %108 = vmatpush1.msra.mxu0 %v69
    %109 = vmatprep.subr.mxu0 0.0
    %110 = vmatpush1.msra.mxu0 %v68
    %111 = vmatprep.subr.mxu0 0.0
    %112 = vmatpush1.msra.mxu0 %v67
    %113 = vmatprep.subr.mxu0 0.0
    %114 = vmatpush1.msra.mxu0 %v66
    %115 = vmatprep.subr.mxu0 0.0
    %116 = vmatpush1.msra.mxu0 %v65
    %117 = vmatprep.subr.mxu0 0.0
    %118 = vmatpush1.msra.mxu0 %v64
    %119 = vmatprep.subr.mxu0 0.0
    %120 = vmatpush2.msra.mxu0 0.0
    %121 = vmatprep.subr.mxu0 0.0
    %122 = vmatpush2.msra.mxu0 0.0
    %123 = vmatprep.subr.mxu0 0.0
    %124 = vmatpush2.msra.mxu0 0.0
    %125 = vmatprep.subr.mxu0 0.0
    %126 = vmatpush2.msra.mxu0 0.0
    %127 = vmatprep.subr.mxu0 0.0
    %128 = vmatpush2.msra.mxu0 0.0
    %129 = vmatprep.subr.mxu0 0.0
    %130 = vmatpush2.msra.mxu0 0.0
    %131 = vmatprep.subr.mxu0 0.0
    %132 = vmatpush2.msra.mxu0 0.0
    %133 = vmatprep.subr.mxu0 0.0
    %134 = vmatpush2.msra.mxu0 0.0
    %135 = vmatprep.subr.mxu0 0.0
    %136 = vmatpush2.msra.mxu0 0.0
    %137 = vmatprep.subr.mxu0 0.0
    %138 = vmatpush2.msra.mxu0 0.0
    %139 = vmatprep.subr.mxu0 0.0
    %140 = vmatpush2.msra.mxu0 0.0
    %141 = vmatprep.subr.mxu0 0.0
    %142 = vmatpush2.msra.mxu0 0.0
    %143 = vmatprep.subr.mxu0 0.0
    %144 = vmatpush2.msra.mxu0 0.0
    %145 = vmatprep.subr.mxu0 0.0
    %146 = vmatpush2.msra.mxu0 0.0
    %147 = vmatprep.subr.mxu0 0.0
    %148 = vmatpush2.msra.mxu0 0.0
    %149 = vmatprep.subr.mxu0 0.0
    %150 = vmatpush2.msra.mxu0 0.0
    %151 = vmatprep.mubr.f32.mxu0 0.0
    %152 = vmatmul.mubr.f32.gmra.mxu0 %v63
    %v153 = vpop.f32.mrf.mxu0
    %v154 = vadd.f32 %v85, %v153
    %v155 = vpop.f32.mrf.mxu0
    %156 = vdwg.mxu0
    %v157 = vld [vmem:[#allocation7] sm:$0xff]
    %v158 = vld [vmem:[#allocation7 + $0x8] sm:$0xff]
    %v159 = vld [vmem:[#allocation7 + $0x10] sm:$0xff]
    %v160 = vld [vmem:[#allocation7 + $0x18] sm:$0xff]
    %v161 = vld [vmem:[#allocation7 + $0x20] sm:$0xff]
    %v162 = vld [vmem:[#allocation7 + $0x28] sm:$0xff]
    %v163 = vld [vmem:[#allocation7 + $0x30] sm:$0xff]
    %v164 = vld [vmem:[#allocation7 + $0x38] sm:$0xff]
    %v165 = vld [vmem:[#allocation7 + $0x40] sm:$0xff]
    %v166 = vld [vmem:[#allocation7 + $0x48] sm:$0xff]
    %v167 = vld [vmem:[#allocation7 + $0x50] sm:$0xff]
    %v168 = vld [vmem:[#allocation7 + $0x58] sm:$0xff]
    %v169 = vld [vmem:[#allocation7 + $0x60] sm:$0xff]
    %v170 = vld [vmem:[#allocation7 + $0x68] sm:$0xff]
    %v171 = vld [vmem:[#allocation7 + $0x70] sm:$0xff]
    %v172 = vld [vmem:[#allocation7 + $0x78] sm:$0xff]
    %v173 = vld [vmem:[%s4] sm:$0x1]
    %v175 = vlaneseq
    %v176 = vshrl.u32 %v175, 7
    %v177 = vsub.s32 0, %v176
    %v178 = vrot.slane %v173, %v177
    %180 = vmatprep.subr.mxu0 0.0
    %181 = vmatpush1.msra.mxu0 %v172
    %182 = vmatprep.subr.mxu0 0.0
    %183 = vmatpush1.msra.mxu0 %v171
    %184 = vmatprep.subr.mxu0 0.0
    %185 = vmatpush1.msra.mxu0 %v170
    %186 = vmatprep.subr.mxu0 0.0
    %187 = vmatpush1.msra.mxu0 %v169
    %188 = vmatprep.subr.mxu0 0.0
    %189 = vmatpush1.msra.mxu0 %v168
    %190 = vmatprep.subr.mxu0 0.0
    %191 = vmatpush1.msra.mxu0 %v167
    %192 = vmatprep.subr.mxu0 0.0
    %193 = vmatpush1.msra.mxu0 %v166
    %194 = vmatprep.subr.mxu0 0.0
    %195 = vmatpush1.msra.mxu0 %v165
    %196 = vmatprep.subr.mxu0 0.0
    %197 = vmatpush1.msra.mxu0 %v164
    %198 = vmatprep.subr.mxu0 0.0
    %199 = vmatpush1.msra.mxu0 %v163
    %200 = vmatprep.subr.mxu0 0.0
    %201 = vmatpush1.msra.mxu0 %v162
    %202 = vmatprep.subr.mxu0 0.0
    %203 = vmatpush1.msra.mxu0 %v161
    %204 = vmatprep.subr.mxu0 0.0
    %205 = vmatpush1.msra.mxu0 %v160
    %206 = vmatprep.subr.mxu0 0.0
    %207 = vmatpush1.msra.mxu0 %v159
    %208 = vmatprep.subr.mxu0 0.0
    %209 = vmatpush1.msra.mxu0 %v158
    %210 = vmatprep.subr.mxu0 0.0
    %211 = vmatpush1.msra.mxu0 %v157
    %212 = vmatprep.subr.mxu0 0.0
    %213 = vmatpush2.msra.mxu0 0.0
    %214 = vmatprep.subr.mxu0 0.0
    %215 = vmatpush2.msra.mxu0 0.0
    %216 = vmatprep.subr.mxu0 0.0
    %217 = vmatpush2.msra.mxu0 0.0
    %218 = vmatprep.subr.mxu0 0.0
    %219 = vmatpush2.msra.mxu0 0.0
    %220 = vmatprep.subr.mxu0 0.0
    %221 = vmatpush2.msra.mxu0 0.0
    %222 = vmatprep.subr.mxu0 0.0
    %223 = vmatpush2.msra.mxu0 0.0
    %224 = vmatprep.subr.mxu0 0.0
    %225 = vmatpush2.msra.mxu0 0.0
    %226 = vmatprep.subr.mxu0 0.0
    %227 = vmatpush2.msra.mxu0 0.0
    %228 = vmatprep.subr.mxu0 0.0
    %229 = vmatpush2.msra.mxu0 0.0
    %230 = vmatprep.subr.mxu0 0.0
    %231 = vmatpush2.msra.mxu0 0.0
    %232 = vmatprep.subr.mxu0 0.0
    %233 = vmatpush2.msra.mxu0 0.0
    %234 = vmatprep.subr.mxu0 0.0
    %235 = vmatpush2.msra.mxu0 0.0
    %236 = vmatprep.subr.mxu0 0.0
    %237 = vmatpush2.msra.mxu0 0.0
    %238 = vmatprep.subr.mxu0 0.0
    %239 = vmatpush2.msra.mxu0 0.0
    %240 = vmatprep.subr.mxu0 0.0
    %241 = vmatpush2.msra.mxu0 0.0
    %242 = vmatprep.subr.mxu0 0.0
    %243 = vmatpush2.msra.mxu0 0.0
    %244 = vmatprep.mubr.f32.mxu0 0.0
    %245 = vmatmul.mubr.f32.gmra.mxu0 %v154
    %v246 = vpop.f32.mrf.mxu0
    %v247 = vadd.f32 %v178, %v246
    %v248 = vpop.f32.mrf.mxu0
    %249 = vdwg.mxu0
    %250 = vst [vmem:[#allocation8] sm:$0xff] %v247
    %251 = vst [vmem:[#allocation9] sm:$0xff] %v154
    // Predicated region
    $region34: #{tpu_custom_call.1} parent=1 // pred_check
      _
    $region35: #{tpu_custom_call.1} parent=1 // pred_check_branch
      %253 = sbr.rel (0) target = $region37
    $region36: #{tpu_custom_call.1} parent=1 // pred_region
      %s255 = ssub.s32 128, 128
      %256 = vsyncadd [#allocation4], %s255
      %s258 = sshll.u32 [#allocation8], 4
      %s259 = int_to_ptr.vmem [resolvable:$true] %s258
      %261 = dma.vmem_to_hbm [thread:$0]  %s259, 128, %s5, [#allocation4]
    $region37: #{tpu_custom_call.1} parent=1 // pred_fallthru
      _
    // Predicated region
    $region38: #{tpu_custom_call.1} parent=1 // pred_check
      _
    $region39: #{tpu_custom_call.1} parent=1 // pred_check_branch
      %263 = sbr.rel (0) target = $region41
    $region40: #{tpu_custom_call.1} parent=1 // pred_region
      %s265 = ssub.s32 128, 128
      %266 = vsyncadd [#allocation10], %s265
      %s268 = sshll.u32 [#allocation9], 4
      %s269 = int_to_ptr.vmem [resolvable:$true] %s268
      %271 = dma.vmem_to_hbm [thread:$0]  %s269, 128, %s6, [#allocation10]
    $region41: #{tpu_custom_call.1} parent=1 // pred_fallthru
      _
    // Predicated region
    $region42: #{tpu_custom_call.1} parent=1 // pred_check
      _
    $region43: #{tpu_custom_call.1} parent=1 // pred_check_branch
      %273 = sbr.rel (0) target = $region45
    $region44: #{tpu_custom_call.1} parent=1 // pred_region
      %274 = dma.done [#allocation4], 128
    $region45: #{tpu_custom_call.1} parent=1 // pred_fallthru
      _
    // Predicated region
    $region46: #{tpu_custom_call.1} parent=1 // pred_check
      _
    $region47: #{tpu_custom_call.1} parent=1 // pred_check_branch
      %276 = sbr.rel (0) target = $region49
    $region48: #{tpu_custom_call.1} parent=1 // pred_region
      %277 = dma.done [#allocation10], 128
    $region49: #{tpu_custom_call.1} parent=1 // pred_fallthru
      _
    %278 = vsyncpa [#allocation3], 1
    %279 = vsyncpa [#allocation6], 1
    %280 = vsyncpa [#allocation4], 1
    %281 = vsyncpa [#allocation10], 1

</llo_original>
